<compile_context>
chip_gen: v6e
topology: v6e:2x2x1
jax: 0.10.0
libtpu: 0.0.40
codegen_flags: <defaults>
</compile_context>

<pallas_src>
import functools

import jax
import jax.numpy as jnp
from jax import lax
from jax.experimental import pallas as pl
from jax.experimental.pallas import tpu as pltpu


_LANE = 128
_MAX_TK = 2048          # K-tile cap: big tiles amortize ~0.35us/step grid overhead
_DEEP_BUFFER_STEPS = 3  # use 3-deep buffering on streamed F tiles when the K
                        # grid has at least this many steps


def _round_up(x, m):
    return (x + m - 1) // m * m


def _vmem_budget_bytes():
    """Per-generation VMEM budget: ~85% of physical capacity.

    v5e/v6e (128 MiB) -> ~108 MiB; v7x (64 MiB) -> ~54 MiB, leaving headroom
    for compiler/internal scratch instead of clamping everything to 64 MiB.
    """
    try:
        cap = int(pltpu.get_tpu_info().vmem_capacity_bytes)
    except Exception:  # conservative fallback if the query is unavailable
        cap = 64 * 2**20
    return int(cap * 0.85)


def _pick_tk(M, K, itemsize, n_mm_buffers, budget):
    """Largest lane-aligned K tile whose buffers fit the VMEM budget."""
    tk = min(_MAX_TK, _round_up(K, _LANE))

    def est(t):
        n_k = pl.cdiv(K, t)
        n_f_buf = _DEEP_BUFFER_STEPS if n_k >= _DEEP_BUFFER_STEPS else 2
        return n_f_buf * M * t * itemsize + n_mm_buffers * M * M * 4

    while tk > _LANE and est(tk) > budget:
        tk -= _LANE
    return tk


def _f_block_spec(M, tk, n_k):
    """Streamed-F BlockSpec; 3-deep buffered when there are enough K steps."""
    if n_k >= _DEEP_BUFFER_STEPS:
        return pl.BlockSpec((M, tk), lambda k: (0, k), pipeline_mode=pl.Buffered(3))
    return pl.BlockSpec((M, tk), lambda k: (0, k))


def _masked_tile(f_ref, *, tk, k_rem):
    """Load the F tile; zero the out-of-range K columns on the last grid step.

    Masking in-kernel (instead of jnp.pad in the wrapper) avoids an extra full
    HBM read+write of the feature matrix whenever K % tk != 0.  Zero columns
    do not change F @ F^T.
    """
    f = f_ref[...]
    if k_rem:  # static: only emitted when K does not divide evenly into tiles
        k = pl.program_id(0)
        limit = jnp.where(k == pl.num_programs(0) - 1, k_rem, tk)
        col = lax.broadcasted_iota(jnp.int32, f.shape, 1)
        f = jnp.where(col < limit, f, jnp.zeros_like(f))
    return f


def _dot_ffT(f):
    """F @ F^T without materializing a transpose (contract last dims of both)."""
    return lax.dot_general(
        f, f,
        dimension_numbers=(((1,), (1,)), ((), ())),
        preferred_element_type=jnp.float32,
    )


def _gram_kernel(f_ref, g_ref, *, inv_denom, tk, k_rem):
    """Accumulate F @ F^T directly into the resident output block."""
    k = pl.program_id(0)

    @pl.when(k == 0)
    def _():
        g_ref[...] = jnp.zeros_like(g_ref)

    g_ref[...] += _dot_ffT(_masked_tile(f_ref, tk=tk, k_rem=k_rem))

    @pl.when(k == pl.num_programs(0) - 1)
    def _():
        g_ref[...] *= inv_denom


def _style_loss_kernel(f_ref, t_ref, loss_ref, acc_ref, *, inv_denom, inv_n, tk, k_rem):
    """Accumulate the Gram in VMEM scratch; emit only the scalar MSE loss."""
    k = pl.program_id(0)

    @pl.when(k == 0)
    def _():
        acc_ref[...] = jnp.zeros_like(acc_ref)

    acc_ref[...] += _dot_ffT(_masked_tile(f_ref, tk=tk, k_rem=k_rem))

    @pl.when(k == pl.num_programs(0) - 1)
    def _():
        diff = acc_ref[...] * inv_denom - t_ref[...]
        loss_ref[0, 0] = jnp.sum(diff * diff) * inv_n


def _prep_features(x):
    """Flatten NCHW -> (M, K) features.  No padding: ragged K is masked in-kernel."""
    a, b, c, d = x.shape
    M, K = a * b, c * d
    f = x.reshape(M, K)
    if f.dtype != jnp.bfloat16:
        # bf16 streams as bf16 (halves HBM bytes); everything else as f32 to
        # keep the style loss numerically close to the f32 reference.
        f = f.astype(jnp.float32)
    return f, M, K, float(a * b * c * d)


@jax.jit
def gram_matrix_pallas(x):
    """G = (F @ F^T) / (a*b*c*d) for NCHW x, computed on the MXU."""
    f, M, K, denom = _prep_features(x)
    budget = _vmem_budget_bytes()
    # Resident M^2 f32 buffers: the (possibly double-buffered) output block.
    tk = _pick_tk(M, K, f.dtype.itemsize, n_mm_buffers=2, budget=budget)
    n_k = pl.cdiv(K, tk)
    kernel = functools.partial(
        _gram_kernel, inv_denom=1.0 / denom, tk=tk, k_rem=K % tk)
    return pl.pallas_call(
        kernel,
        out_shape=jax.ShapeDtypeStruct((M, M), jnp.float32),
        grid_spec=pltpu.PrefetchScalarGridSpec(
            num_scalar_prefetch=0,
            grid=(n_k,),
            in_specs=[_f_block_spec(M, tk, n_k)],
            out_specs=pl.BlockSpec((M, M), lambda k: (0, 0)),  # resident accumulator
        ),
        compiler_params=pltpu.CompilerParams(
            dimension_semantics=("arbitrary",),  # K axis is a reduction
            vmem_limit_bytes=budget,
        ),
        cost_estimate=pl.CostEstimate(
            flops=2 * M * M * K,
            transcendentals=0,
            bytes_accessed=M * K * f.dtype.itemsize + M * M * 4,
        ),
    )(f)


@jax.jit
def style_loss_pallas(x, target_gram):
    """MSE(gram(x), target_gram) without writing the M^2 Gram back to HBM."""
    f, M, K, denom = _prep_features(x)
    budget = _vmem_budget_bytes()
    # Resident M^2 f32 buffers: Gram scratch + (double-buffered) target.
    tk = _pick_tk(M, K, f.dtype.itemsize, n_mm_buffers=3, budget=budget)
    n_k = pl.cdiv(K, tk)
    kernel = functools.partial(
        _style_loss_kernel,
        inv_denom=1.0 / denom, inv_n=1.0 / float(M * M), tk=tk, k_rem=K % tk)
    loss = pl.pallas_call(
        kernel,
        out_shape=jax.ShapeDtypeStruct((1, 1), jnp.float32),
        grid_spec=pltpu.PrefetchScalarGridSpec(
            num_scalar_prefetch=0,
            grid=(n_k,),
            in_specs=[
                _f_block_spec(M, tk, n_k),                 # streamed F tiles
                pl.BlockSpec((M, M), lambda k: (0, 0)),    # target Gram (resident)
            ],
            out_specs=pl.BlockSpec(memory_space=pltpu.SMEM),   # scalar loss in SMEM
            scratch_shapes=[pltpu.VMEM((M, M), jnp.float32)],  # Gram accumulator
        ),
        compiler_params=pltpu.CompilerParams(
            dimension_semantics=("arbitrary",),
            vmem_limit_bytes=budget,
        ),
        cost_estimate=pl.CostEstimate(
            flops=2 * M * M * K,
            transcendentals=0,
            bytes_accessed=M * K * f.dtype.itemsize + M * M * 4 + 4,
        ),
    )(f, target_gram.astype(jnp.float32))
    return loss[0, 0]


class StyleLossPallas:
    """Pallas equivalent of the PyTorch StyleLoss module."""

    def __init__(self, target):
        # target.detach() in torch -> stop_gradient here; Gram computed once.
        self.target = gram_matrix_pallas(lax.stop_gradient(target))

    def __call__(self, x):
        # Forward is transparent: compute loss vs. stored target, return x as-is.
        self.loss = style_loss_pallas(x, self.target)
        return x


def _reference_gram(x):
    a, b, c, d = x.shape
    f = x.reshape(a * b, c * d).astype(jnp.float32)
    return (f @ f.T) / (a * b * c * d)


if __name__ == "__main__":
    key = jax.random.PRNGKey(0)
    k_t, k_x, k_t2, k_x2 = jax.random.split(key, 4)

    # Small NCHW conv-activation shapes.
    target = jax.random.normal(k_t, (2, 4, 16, 16), dtype=jnp.float32)
    x = jax.random.normal(k_x, (2, 4, 16, 16), dtype=jnp.float32)

    module = StyleLossPallas(target)
    out = module(x)
    out = jax.block_until_ready(out)
    loss = jax.block_until_ready(module.loss)

    # Cross-check against a pure-JAX reference.
    g_ref_t = _reference_gram(target)
    g_ref_x = _reference_gram(x)
    loss_ref = jnp.mean((g_ref_x - g_ref_t) ** 2)

    assert out.shape == x.shape and jnp.allclose(out, x), "forward must be identity"
    assert jnp.allclose(module.target, g_ref_t, rtol=1e-5, atol=1e-5)
    assert jnp.allclose(loss, loss_ref, rtol=1e-5, atol=1e-6), (loss, loss_ref)

    # Ragged-K shapes (K = 400 is not a multiple of the 128-lane K tile):
    # exercises the in-kernel tail masking that replaced the wrapper jnp.pad.
    target2 = jax.random.normal(k_t2, (2, 4, 20, 20), dtype=jnp.float32)
    x2 = jax.random.normal(k_x2, (2, 4, 20, 20), dtype=jnp.float32)
    module2 = StyleLossPallas(target2)
    out2 = jax.block_until_ready(module2(x2))
    loss2 = jax.block_until_ready(module2.loss)
    loss2_ref = jnp.mean((_reference_gram(x2) - _reference_gram(target2)) ** 2)
    assert out2.shape == x2.shape and jnp.allclose(out2, x2)
    assert jnp.allclose(module2.target, _reference_gram(target2), rtol=1e-5, atol=1e-5)
    assert jnp.allclose(loss2, loss2_ref, rtol=1e-5, atol=1e-6), (loss2, loss2_ref)

    print("KERNEL_OK")
</pallas_src>

<mosaic_0001>
module attributes {stable_mosaic.version = 11 : i64} {
  func.func @_gram_kernel(%arg0: i32, %arg1: memref<8x256xf32, #tpu.memory_space<vmem>>, %arg2: memref<8x8xf32, #tpu.memory_space<vmem>>) attributes {dimension_semantics = [#tpu.dimension_semantics<arbitrary>], iteration_bounds = array<i64: 1>, scalar_prefetch = 0 : i64, scratch_operands = 0 : i64, tpu.core_type = #tpu.core_type<tc>, window_params = [{transform_indices = @transform_0, window_bounds = array<i64: 8, 256>}, {pipeline_mode = #tpu.pipeline_mode<synchronous>, transform_indices = @transform_1, window_bounds = array<i64: 8, 8>}]} {
    %c0_i32 = arith.constant 0 : i32
    %0 = arith.cmpi eq, %arg0, %c0_i32 : i32
    %1 = arith.extui %0 : i1 to i32
    %c0_i32_0 = arith.constant 0 : i32
    %2 = arith.cmpi ne, %1, %c0_i32_0 : i32
    scf.if %2 {
      %cst_8 = arith.constant 0.000000e+00 : f32
      %11 = vector.broadcast %cst_8 : f32 to vector<8x8xf32>
      %c0_9 = arith.constant 0 : index
      %c0_10 = arith.constant 0 : index
      %12 = vector.load %arg2[%c0_9, %c0_10] : memref<8x8xf32, #tpu.memory_space<vmem>>, vector<8x8xf32>
      tpu.vector_store %arg2[%c0_9, %c0_10], %11 {strides = array<i32>} : memref<8x8xf32, #tpu.memory_space<vmem>>, vector<8x8xf32>,
    } else {
    }
    %c0 = arith.constant 0 : index
    %c0_1 = arith.constant 0 : index
    %3 = vector.load %arg2[%c0, %c0_1] : memref<8x8xf32, #tpu.memory_space<vmem>>, vector<8x8xf32>
    %c0_2 = arith.constant 0 : index
    %c0_3 = arith.constant 0 : index
    %4 = vector.load %arg1[%c0_2, %c0_3] : memref<8x256xf32, #tpu.memory_space<vmem>>, vector<8x256xf32>
    %cst = arith.constant dense<0.000000e+00> : vector<8x8xf32>
    %5 = tpu.matmul %4, %4, %cst {dimension_numbers = #tpu.dot_dimension_numbers<[1], [1], [0], [0], [0, 0, 1, 0], [], []>} : vector<8x256xf32>, vector<8x256xf32>, vector<8x8xf32> -> vector<8x8xf32>
    %6 = arith.addf %3, %5 : vector<8x8xf32>
    %c0_4 = arith.constant 0 : index
    %c0_5 = arith.constant 0 : index
    %7 = vector.load %arg2[%c0_4, %c0_5] : memref<8x8xf32, #tpu.memory_space<vmem>>, vector<8x8xf32>
    tpu.vector_store %arg2[%c0_4, %c0_5], %6 {strides = array<i32>} : memref<8x8xf32, #tpu.memory_space<vmem>>, vector<8x8xf32>,
    %c0_i32_6 = arith.constant 0 : i32
    %8 = arith.cmpi eq, %arg0, %c0_i32_6 : i32
    %9 = arith.extui %8 : i1 to i32
    %c0_i32_7 = arith.constant 0 : i32
    %10 = arith.cmpi ne, %9, %c0_i32_7 : i32
    scf.if %10 {
      %c0_8 = arith.constant 0 : index
      %c0_9 = arith.constant 0 : index
      %11 = vector.load %arg2[%c0_8, %c0_9] : memref<8x8xf32, #tpu.memory_space<vmem>>, vector<8x8xf32>
      %cst_10 = arith.constant 4.8828125E-4 : f32
      %12 = vector.broadcast %cst_10 : f32 to vector<8x8xf32>
      %13 = arith.mulf %11, %12 : vector<8x8xf32>
      %c0_11 = arith.constant 0 : index
      %c0_12 = arith.constant 0 : index
      %14 = vector.load %arg2[%c0_11, %c0_12] : memref<8x8xf32, #tpu.memory_space<vmem>>, vector<8x8xf32>
      tpu.vector_store %arg2[%c0_11, %c0_12], %13 {strides = array<i32>} : memref<8x8xf32, #tpu.memory_space<vmem>>, vector<8x8xf32>,
    } else {
    }
    return
  }
  func.func @transform_0(%arg0: i32) -> (i32, i32) {
    %c0_i32 = arith.constant 0 : i32
    %c0_i32_0 = arith.constant 0 : i32
    return %c0_i32, %arg0 : i32, i32
  }
  func.func @transform_1(%arg0: i32) -> (i32, i32) {
    %c0_i32 = arith.constant 0 : i32
    %c0_i32_0 = arith.constant 0 : i32
    %c0_i32_1 = arith.constant 0 : i32
    return %c0_i32, %c0_i32_0 : i32, i32
  }
}

</mosaic_0001>

<llo_original>
// kernel: gram_matrix_pallas.1
$region0: #{gram_matrix_pallas.1}
  #allocation0 [shape = 'u32[]', space=smem, size = 0x4, offset = 0x4, fixed_abs, tag = 'smem constant byte address 0x4 - core index']
  #allocation1 [shape = 'u32[144,128]{1,0:T(1,128)}', space=vmem, size = 0x12000, scoped, tag = 'internal scratch']
  %s0 = inlined_call_operand.vmem [shape: f32[8,256], index: 0, kind: input, shape index: {}]
  %s1 = inlined_call_operand.hbm [shape: f32[8,8], index: 1, kind: output, shape index: {}]
  %s2 = sld [smem:[#allocation0]]
  $region22: #{gram_matrix_pallas.1} parent=0
    _
  %s4 = ssub.s32 1, %s2
  %s5 = scalar_select 0, %s4, %s2
  $region1: #{gram_matrix_pallas.1} parent=0
    #allocation2 [shape = 'u8[4096]{0}', space=vmem, size = 0x1000, scoped, tag = 'output window, operand 0, single buffered']
    #allocation3 [shape = 's32[1]{0}', space=sflag, size = 0x4, scoped, tag = 'scoped memory for gram_matrix_pallas.1']
    %6 = vsyncpa [#allocation3], 0
    // Predicated region
    $region2: #{gram_matrix_pallas.1} parent=1 // pred_check
      _
    $region3: #{gram_matrix_pallas.1} parent=1 // pred_check_branch
      %8 = sbr.rel (0) target = $region5
    $region4: #{gram_matrix_pallas.1} parent=1 // pred_region
      _
    $region5: #{gram_matrix_pallas.1} parent=1 // pred_fallthru
      _
    %p9 = scmp.eq.s32.totalorder 0, 0
    // Predicated region
    $region6: #{gram_matrix_pallas.1} parent=1 // pred_check
      %p10 = pneg %p9
    $region7: #{gram_matrix_pallas.1} parent=1 // pred_check_branch
      %12 = sbr.rel (%p10) target = $region9
    $region8: #{gram_matrix_pallas.1} parent=1 // pred_region
      %vm13 = vcmask 64512
      %14 = vst.msk [vmem:[#allocation2] sm:$0xff] %vm13, 0.0
    $region9: #{gram_matrix_pallas.1} parent=1 // pred_fallthru
      _
    %v15 = vld [vmem:[#allocation2] sm:$0xff]
    %v16 = vld [vmem:[%s0] sm:$0xff]
    %v17 = vld [vmem:[%s0 + $0x8] sm:$0xff]
    %18 = vmatprep.subr.mxu0 0.0
    %19 = vmatpush1.xpose.msra.mxu0 0.0
    %20 = vmatprep.subr.mxu0 0.0
    %21 = vmatpush1.xpose.msra.mxu0 0.0
    %22 = vmatprep.subr.mxu0 0.0
    %23 = vmatpush1.xpose.msra.mxu0 0.0
    %24 = vmatprep.subr.mxu0 0.0
    %25 = vmatpush1.xpose.msra.mxu0 0.0
    %26 = vmatprep.subr.mxu0 0.0
    %27 = vmatpush1.xpose.msra.mxu0 0.0
    %28 = vmatprep.subr.mxu0 0.0
    %29 = vmatpush1.xpose.msra.mxu0 0.0
    %30 = vmatprep.subr.mxu0 0.0
    %31 = vmatpush1.xpose.msra.mxu0 0.0
    %32 = vmatprep.subr.mxu0 0.0
    %33 = vmatpush1.xpose.msra.mxu0 0.0
    %34 = vmatprep.subr.mxu0 0.0
    %35 = vmatpush1.xpose.msra.mxu0 0.0
    %36 = vmatprep.subr.mxu0 0.0
    %37 = vmatpush1.xpose.msra.mxu0 0.0
    %38 = vmatprep.subr.mxu0 0.0
    %39 = vmatpush1.xpose.msra.mxu0 0.0
    %40 = vmatprep.subr.mxu0 0.0
    %41 = vmatpush1.xpose.msra.mxu0 0.0
    %42 = vmatprep.subr.mxu0 0.0
    %43 = vmatpush1.xpose.msra.mxu0 0.0
    %44 = vmatprep.subr.mxu0 0.0
    %45 = vmatpush1.xpose.msra.mxu0 0.0
    %46 = vmatprep.subr.mxu0 0.0
    %47 = vmatpush1.xpose.msra.mxu0 0.0
    %48 = vmatprep.subr.mxu0 %v17
    %49 = vmatpush1.xpose.msra.mxu0 %v16
    %50 = vmatprep.subr.mxu0 0.0
    %51 = vmatpush2.xpose.msra.mxu0 0.0
    %52 = vmatprep.subr.mxu0 0.0
    %53 = vmatpush2.xpose.msra.mxu0 0.0
    %54 = vmatprep.subr.mxu0 0.0
    %55 = vmatpush2.xpose.msra.mxu0 0.0
    %56 = vmatprep.subr.mxu0 0.0
    %57 = vmatpush2.xpose.msra.mxu0 0.0
    %58 = vmatprep.subr.mxu0 0.0
    %59 = vmatpush2.xpose.msra.mxu0 0.0
    %60 = vmatprep.subr.mxu0 0.0
    %61 = vmatpush2.xpose.msra.mxu0 0.0
    %62 = vmatprep.subr.mxu0 0.0
    %63 = vmatpush2.xpose.msra.mxu0 0.0
    %64 = vmatprep.subr.mxu0 0.0
    %65 = vmatpush2.xpose.msra.mxu0 0.0
    %66 = vmatprep.subr.mxu0 0.0
    %67 = vmatpush2.xpose.msra.mxu0 0.0
    %68 = vmatprep.subr.mxu0 0.0
    %69 = vmatpush2.xpose.msra.mxu0 0.0
    %70 = vmatprep.subr.mxu0 0.0
    %71 = vmatpush2.xpose.msra.mxu0 0.0
    %72 = vmatprep.subr.mxu0 0.0
    %73 = vmatpush2.xpose.msra.mxu0 0.0
    %74 = vmatprep.subr.mxu0 0.0
    %75 = vmatpush2.xpose.msra.mxu0 0.0
    %76 = vmatprep.subr.mxu0 0.0
    %77 = vmatpush2.xpose.msra.mxu0 0.0
    %78 = vmatprep.subr.mxu0 0.0
    %79 = vmatpush2.xpose.msra.mxu0 0.0
    %80 = vmatprep.subr.mxu0 0.0
    %81 = vmatpush2.xpose.msra.mxu0 0.0
    %82 = vmatprep.mubr.f32.mxu0 %v17
    %83 = vmatmul.mubr.f32.gmra.mxu0 %v16
    %v84 = vpop.f32.mrf.mxu0
    %v85 = vadd.f32 0.0, %v84
    %v86 = vpop.f32.mrf.mxu0
    %87 = vdwg.mxu0
    %v88 = vadd.f32 %v15, %v85
    %vm89 = vcmask 64512
    %90 = vst.msk [vmem:[#allocation2] sm:$0xff] %vm89, %v88
    // Predicated region
    $region10: #{gram_matrix_pallas.1} parent=1 // pred_check
      %p91 = pneg %p9
    $region11: #{gram_matrix_pallas.1} parent=1 // pred_check_branch
      %93 = sbr.rel (%p91) target = $region13
    $region12: #{gram_matrix_pallas.1} parent=1 // pred_region
      %v94 = vld [vmem:[#allocation2] sm:$0xff]
      %v95 = vmul.f32 %v94, 0.00048828125
      %96 = vst.msk [vmem:[#allocation2] sm:$0xff] %vm89, %v95
    $region13: #{gram_matrix_pallas.1} parent=1 // pred_fallthru
      _
    // Predicated region
    $region14: #{gram_matrix_pallas.1} parent=1 // pred_check
      _
    $region15: #{gram_matrix_pallas.1} parent=1 // pred_check_branch
      %98 = sbr.rel (0) target = $region17
    $region16: #{gram_matrix_pallas.1} parent=1 // pred_region
      %s100 = ssub.s32 128, 128
      %101 = vsyncadd [#allocation3], %s100
      %s103 = sshll.u32 [#allocation2], 4
      %s104 = int_to_ptr.vmem [resolvable:$true] %s103
      %106 = dma.vmem_to_hbm [thread:$0]  %s104, 128, %s1, [#allocation3]
    $region17: #{gram_matrix_pallas.1} parent=1 // pred_fallthru
      _
    // Predicated region
    $region18: #{gram_matrix_pallas.1} parent=1 // pred_check
      _
    $region19: #{gram_matrix_pallas.1} parent=1 // pred_check_branch
      %108 = sbr.rel (0) target = $region21
    $region20: #{gram_matrix_pallas.1} parent=1 // pred_region
      %109 = dma.done [#allocation3], 128
    $region21: #{gram_matrix_pallas.1} parent=1 // pred_fallthru
      _
    %110 = vsyncpa [#allocation3], 1

</llo_original>
